<compile_context>
chip_gen: v7x
topology: tpu7x:2x2x1
jax: 0.10.0
libtpu: 0.0.40
codegen_flags: <defaults>
</compile_context>

<pallas_src>
import functools

import jax
import jax.numpy as jnp
from jax.experimental import pallas as pl
from jax.experimental.pallas import tpu as pltpu


def channel_attention_kernel(x_ref, w1a_t_ref, w2a_t_ref, w1b_ref, w2b_ref,
                             o_ref, *, tb, c):
    # x_ref block: (TB*C, HW) -- lane-dense spatial axis, sublane-dense rows.
    x = x_ref[...]
    hw = x.shape[-1]

    # AdaptiveAvgPool2d(1) / AdaptiveMaxPool2d(1): lane reductions per row.
    # Average accumulates in f32 (exact match w/ reference even for bf16 x);
    # max is exact in the raw dtype, cast only the pooled column.
    avg = jnp.sum(x, axis=1, keepdims=True, dtype=jnp.float32) * (1.0 / hw)  # (TB*C, 1)
    mx = jnp.max(x, axis=1, keepdims=True).astype(jnp.float32)               # (TB*C, 1)

    w1a_t = w1a_t_ref[...].astype(jnp.float32)   # (C, Ch)
    w2a_t = w2a_t_ref[...].astype(jnp.float32)   # (C, Ch)
    w1b = w1b_ref[...].astype(jnp.float32)       # (C, Ch)
    w2b = w2b_ref[...].astype(jnp.float32)       # (C, Ch)

    # Tiny per-batch FC stage (VPU broadcast-reduces; kept off the MXU).
    # `tb` is a small static count -> static unroll of a handful of vreg ops.
    for b in range(tb):
        r0 = b * c
        avg_b = avg[r0:r0 + c, :]                 # (C, 1)
        max_b = mx[r0:r0 + c, :]                  # (C, 1)

        # First 1x1 conv of each branch (weights pre-transposed to (C, Ch)).
        h1 = jnp.sum(w1a_t * avg_b, axis=0, keepdims=True)   # (1, Ch)
        h2 = jnp.sum(w2a_t * max_b, axis=0, keepdims=True)   # (1, Ch)

        # SetActivation("SiLU")
        h1 = h1 * jax.nn.sigmoid(h1)
        h2 = h2 * jax.nn.sigmoid(h2)

        # Second 1x1 convs + add (two lane reduces; no concat), then sigmoid.
        att_b = (jnp.sum(w1b * h1, axis=1, keepdims=True)
                 + jnp.sum(w2b * h2, axis=1, keepdims=True))  # (C, 1)
        att_b = jax.nn.sigmoid(att_b)

        o_ref[r0:r0 + c, :] = att_b.astype(o_ref.dtype)


def _batches_per_block(batch, c, hw, itemsize,
                       target_bytes=1 << 20,      # aim ~1 MiB input block
                       max_block_bytes=8 << 20,   # keep double-buffered blocks small vs VMEM limit
                       max_unroll=32):            # bound FC unroll
    per_batch = c * hw * itemsize
    # Keep >= 2 grid steps when batch >= 2 so v7x can shard across both TCs.
    cap = max(1, batch // 2)
    cap = min(cap, max(1, max_block_bytes // per_batch), max_unroll)
    want = max(1, min(cap, -(-target_bytes // per_batch)))
    # Largest divisor of `batch` that is <= want (no padded partial blocks).
    tb = 1
    for d in range(1, want + 1):
        if batch % d == 0:
            tb = d
    return tb


def channel_attention(x, params):
    B, C, H, W = x.shape
    Ch = C // 2
    HW = H * W
    itemsize = jnp.dtype(x.dtype).itemsize

    TB = _batches_per_block(B, C, HW, itemsize)
    G = B // TB
    TR = TB * C

    # (B, C, H, W) -> (G, TB*C, H*W): lane-dense spatial axis (HW multiple of
    # 128 here) and TB*C rows per block packing the sublanes.
    x3 = x.reshape(G, TR, HW)

    # Glue: pre-transpose the first-layer 1x1 conv weights so the kernel only
    # does broadcast-multiply + axis reductions.
    w1a_t = params["w1a"].T                        # (C, Ch)
    w2a_t = params["w2a"].T                        # (C, Ch)

    kernel = functools.partial(channel_attention_kernel, tb=TB, c=C)
    wspec = lambda: pl.BlockSpec((C, Ch), lambda g: (0, 0))   # grid-invariant

    att = pl.pallas_call(
        kernel,
        out_shape=jax.ShapeDtypeStruct((G, TR, 1), x.dtype),
        grid=(G,),
        in_specs=[
            pl.BlockSpec((None, TR, HW), lambda g: (g, 0, 0)),   # x slab
            wspec(),   # w1a^T
            wspec(),   # w2a^T
            wspec(),   # w1b
            wspec(),   # w2b
        ],
        out_specs=pl.BlockSpec((None, TR, 1), lambda g: (g, 0, 0)),
        compiler_params=pltpu.CompilerParams(
            dimension_semantics=("parallel",),
            # Blocks are capped at 8 MiB, so double-buffered in/out stays far
            # below this on every generation (v7x: 64 MiB physical VMEM).
            vmem_limit_bytes=32 * 1024 * 1024,
        ),
    )(x3, w1a_t, w2a_t, params["w1b"], params["w2b"])

    # expand(-1, -1, H, W): a pure broadcast of C scalars per batch -- done by
    # XLA here so the kernel never writes B*C*H*W replicated bytes.
    att = att.reshape(B, C, 1, 1)
    return jnp.broadcast_to(att, (B, C, H, W))


def reference(x, params):
    """Pure-JAX reference replicating the PyTorch forward exactly."""
    avg_c = jnp.mean(x, axis=(2, 3), keepdims=True)   # (B, C, 1, 1)
    max_c = jnp.max(x, axis=(2, 3), keepdims=True)    # (B, C, 1, 1)

    def fc(v, wa, wb):
        h = jnp.einsum("oc,bcij->boij", wa, v)
        h = h * jax.nn.sigmoid(h)                     # SiLU
        return jnp.einsum("oc,bcij->boij", wb, h)

    att = jax.nn.sigmoid(
        fc(avg_c, params["w1a"], params["w1b"])
        + fc(max_c, params["w2a"], params["w2b"])
    )                                                 # (B, C, 1, 1)
    B, C, H, W = x.shape
    return jnp.broadcast_to(att, (B, C, H, W))


if __name__ == "__main__":
    B, C, H, W = 2, 4, 16, 16
    key = jax.random.PRNGKey(0)
    ks = jax.random.split(key, 5)

    x = jax.random.normal(ks[0], (B, C, H, W), jnp.float32)
    params = dict(
        w1a=0.3 * jax.random.normal(ks[1], (C // 2, C), jnp.float32),  # fc1 conv1 (1x1, no bias)
        w1b=0.3 * jax.random.normal(ks[2], (C, C // 2), jnp.float32),  # fc1 conv2 (1x1, no bias)
        w2a=0.3 * jax.random.normal(ks[3], (C // 2, C), jnp.float32),  # fc2 conv1 (1x1, no bias)
        w2b=0.3 * jax.random.normal(ks[4], (C, C // 2), jnp.float32),  # fc2 conv2 (1x1, no bias)
    )

    out = jax.block_until_ready(channel_attention(x, params))
    ref = jax.block_until_ready(reference(x, params))

    assert out.shape == (B, C, H, W), out.shape
    max_err = float(jnp.max(jnp.abs(out - ref)))
    assert jnp.allclose(out, ref, atol=1e-5, rtol=1e-5), max_err
    print("KERNEL_OK")
</pallas_src>

<mosaic_0001>
module attributes {stable_mosaic.version = 11 : i64} {
  func.func @channel_attention_kernel(%arg0: i32, %arg1: memref<1x4x256xf32, #tpu.memory_space<vmem>>, %arg2: memref<4x2xf32, #tpu.memory_space<vmem>>, %arg3: memref<4x2xf32, #tpu.memory_space<vmem>>, %arg4: memref<4x2xf32, #tpu.memory_space<vmem>>, %arg5: memref<4x2xf32, #tpu.memory_space<vmem>>, %arg6: memref<1x4x1xf32, #tpu.memory_space<vmem>>) attributes {dimension_semantics = [#tpu.dimension_semantics<parallel>], iteration_bounds = array<i64: 2>, scalar_prefetch = 0 : i64, scratch_operands = 0 : i64, tpu.core_type = #tpu.core_type<tc>, window_params = [{transform_indices = @transform_0, window_bounds = array<i64: 1, 4, 256>}, {pipeline_mode = #tpu.pipeline_mode<synchronous>, transform_indices = @transform_1, window_bounds = array<i64: 4, 2>}, {pipeline_mode = #tpu.pipeline_mode<synchronous>, transform_indices = @transform_2, window_bounds = array<i64: 4, 2>}, {pipeline_mode = #tpu.pipeline_mode<synchronous>, transform_indices = @transform_3, window_bounds = array<i64: 4, 2>}, {pipeline_mode = #tpu.pipeline_mode<synchronous>, transform_indices = @transform_4, window_bounds = array<i64: 4, 2>}, {transform_indices = @transform_5, window_bounds = array<i64: 1, 4, 1>}]} {
    %c0 = arith.constant 0 : index
    %c0_0 = arith.constant 0 : index
    %c0_1 = arith.constant 0 : index
    %0 = vector.load %arg1[%c0, %c0_0, %c0_1] : memref<1x4x256xf32, #tpu.memory_space<vmem>>, vector<1x4x256xf32>
    %1 = vector.shape_cast %0 : vector<1x4x256xf32> to vector<4x256xf32>
    %cst = arith.constant dense<0.000000e+00> : vector<4xf32>
    %2 = vector.multi_reduction <add>, %1, %cst [1] : vector<4x256xf32> to vector<4xf32>
    %3 = vector.shape_cast %2 : vector<4xf32> to vector<4x1xf32>
    %cst_2 = arith.constant 3.906250e-03 : f32
    %4 = vector.broadcast %cst_2 : f32 to vector<4x1xf32>
    %5 = arith.mulf %3, %4 : vector<4x1xf32>
    %cst_3 = arith.constant dense<0xFF800000> : vector<4xf32>
    %6 = vector.multi_reduction <maximumf>, %1, %cst_3 [1] : vector<4x256xf32> to vector<4xf32>
    %7 = vector.shape_cast %6 : vector<4xf32> to vector<4x1xf32>
    %c0_4 = arith.constant 0 : index
    %c0_5 = arith.constant 0 : index
    %8 = vector.load %arg2[%c0_4, %c0_5] : memref<4x2xf32, #tpu.memory_space<vmem>>, vector<4x2xf32>
    %c0_6 = arith.constant 0 : index
    %c0_7 = arith.constant 0 : index
    %9 = vector.load %arg3[%c0_6, %c0_7] : memref<4x2xf32, #tpu.memory_space<vmem>>, vector<4x2xf32>
    %c0_8 = arith.constant 0 : index
    %c0_9 = arith.constant 0 : index
    %10 = vector.load %arg4[%c0_8, %c0_9] : memref<4x2xf32, #tpu.memory_space<vmem>>, vector<4x2xf32>
    %c0_10 = arith.constant 0 : index
    %c0_11 = arith.constant 0 : index
    %11 = vector.load %arg5[%c0_10, %c0_11] : memref<4x2xf32, #tpu.memory_space<vmem>>, vector<4x2xf32>
    %12 = vector.broadcast %5 : vector<4x1xf32> to vector<4x2xf32>
    %13 = arith.mulf %8, %12 : vector<4x2xf32>
    %cst_12 = arith.constant dense<0.000000e+00> : vector<2xf32>
    %14 = vector.multi_reduction <add>, %13, %cst_12 [0] : vector<4x2xf32> to vector<2xf32>
    %15 = vector.shape_cast %14 : vector<2xf32> to vector<1x2xf32>
    %16 = vector.broadcast %7 : vector<4x1xf32> to vector<4x2xf32>
    %17 = arith.mulf %9, %16 : vector<4x2xf32>
    %cst_13 = arith.constant dense<0.000000e+00> : vector<2xf32>
    %18 = vector.multi_reduction <add>, %17, %cst_13 [0] : vector<4x2xf32> to vector<2xf32>
    %19 = vector.shape_cast %18 : vector<2xf32> to vector<1x2xf32>
    %20 = arith.negf %15 : vector<1x2xf32>
    %21 = math.exp %20 : vector<1x2xf32>
    %cst_14 = arith.constant 1.000000e+00 : f32
    %22 = vector.broadcast %cst_14 : f32 to vector<1x2xf32>
    %23 = arith.addf %22, %21 : vector<1x2xf32>
    %24 = arith.divf %22, %23 : vector<1x2xf32>
    %25 = arith.mulf %15, %24 : vector<1x2xf32>
    %26 = arith.negf %19 : vector<1x2xf32>
    %27 = math.exp %26 : vector<1x2xf32>
    %cst_15 = arith.constant 1.000000e+00 : f32
    %28 = vector.broadcast %cst_15 : f32 to vector<1x2xf32>
    %29 = arith.addf %28, %27 : vector<1x2xf32>
    %30 = arith.divf %28, %29 : vector<1x2xf32>
    %31 = arith.mulf %19, %30 : vector<1x2xf32>
    %32 = vector.broadcast %25 : vector<1x2xf32> to vector<4x2xf32>
    %33 = arith.mulf %10, %32 : vector<4x2xf32>
    %cst_16 = arith.constant dense<0.000000e+00> : vector<4xf32>
    %34 = vector.multi_reduction <add>, %33, %cst_16 [1] : vector<4x2xf32> to vector<4xf32>
    %35 = vector.shape_cast %34 : vector<4xf32> to vector<4x1xf32>
    %36 = vector.broadcast %31 : vector<1x2xf32> to vector<4x2xf32>
    %37 = arith.mulf %11, %36 : vector<4x2xf32>
    %cst_17 = arith.constant dense<0.000000e+00> : vector<4xf32>
    %38 = vector.multi_reduction <add>, %37, %cst_17 [1] : vector<4x2xf32> to vector<4xf32>
    %39 = vector.shape_cast %38 : vector<4xf32> to vector<4x1xf32>
    %40 = arith.addf %35, %39 : vector<4x1xf32>
    %41 = arith.negf %40 : vector<4x1xf32>
    %42 = math.exp %41 : vector<4x1xf32>
    %cst_18 = arith.constant 1.000000e+00 : f32
    %43 = vector.broadcast %cst_18 : f32 to vector<4x1xf32>
    %44 = arith.addf %43, %42 : vector<4x1xf32>
    %45 = arith.divf %43, %44 : vector<4x1xf32>
    %c0_19 = arith.constant 0 : index
    %c0_20 = arith.constant 0 : index
    %c0_21 = arith.constant 0 : index
    %46 = vector.load %arg6[%c0_19, %c0_20, %c0_21] : memref<1x4x1xf32, #tpu.memory_space<vmem>>, vector<1x4x1xf32>
    %47 = vector.shape_cast %46 : vector<1x4x1xf32> to vector<4x1xf32>
    %48 = vector.shape_cast %45 : vector<4x1xf32> to vector<1x4x1xf32>
    tpu.vector_store %arg6[%c0_19, %c0_20, %c0_21], %48 {strides = array<i32>} : memref<1x4x1xf32, #tpu.memory_space<vmem>>, vector<1x4x1xf32>,
    return
  }
  func.func @transform_0(%arg0: i32) -> (i32, i32, i32) {
    %c0_i32 = arith.constant 0 : i32
    %c0_i32_0 = arith.constant 0 : i32
    %c0_i32_1 = arith.constant 0 : i32
    return %arg0, %c0_i32, %c0_i32_0 : i32, i32, i32
  }
  func.func @transform_1(%arg0: i32) -> (i32, i32) {
    %c0_i32 = arith.constant 0 : i32
    %c0_i32_0 = arith.constant 0 : i32
    %c0_i32_1 = arith.constant 0 : i32
    return %c0_i32, %c0_i32_0 : i32, i32
  }
  func.func @transform_2(%arg0: i32) -> (i32, i32) {
    %c0_i32 = arith.constant 0 : i32
    %c0_i32_0 = arith.constant 0 : i32
    %c0_i32_1 = arith.constant 0 : i32
    return %c0_i32, %c0_i32_0 : i32, i32
  }
  func.func @transform_3(%arg0: i32) -> (i32, i32) {
    %c0_i32 = arith.constant 0 : i32
    %c0_i32_0 = arith.constant 0 : i32
    %c0_i32_1 = arith.constant 0 : i32
    return %c0_i32, %c0_i32_0 : i32, i32
  }
  func.func @transform_4(%arg0: i32) -> (i32, i32) {
    %c0_i32 = arith.constant 0 : i32
    %c0_i32_0 = arith.constant 0 : i32
    %c0_i32_1 = arith.constant 0 : i32
    return %c0_i32, %c0_i32_0 : i32, i32
  }
  func.func @transform_5(%arg0: i32) -> (i32, i32, i32) {
    %c0_i32 = arith.constant 0 : i32
    %c0_i32_0 = arith.constant 0 : i32
    %c0_i32_1 = arith.constant 0 : i32
    return %arg0, %c0_i32, %c0_i32_0 : i32, i32, i32
  }
}

</mosaic_0001>

<llo_original>
// kernel: tpu_custom_call.1
$region0: #{tpu_custom_call.1}
  #allocation0 [shape = 'u32[]', space=smem, size = 0x4, offset = 0x4, fixed_abs, tag = 'smem constant byte address 0x4 - core index']
  #allocation1 [shape = 'u32[144,128]{1,0:T(1,128)}', space=vmem, size = 0x12000, scoped, tag = 'internal scratch']
  %s0 = inlined_call_operand.vmem [shape: f32[2,4,256], index: 0, kind: input, shape index: {}]
  %s1 = inlined_call_operand.vmem [shape: f32[4,2], index: 1, kind: input, shape index: {}]
  %s2 = inlined_call_operand.vmem [shape: f32[4,2], index: 2, kind: input, shape index: {}]
  %s3 = inlined_call_operand.vmem [shape: f32[4,2], index: 3, kind: input, shape index: {}]
  %s4 = inlined_call_operand.vmem [shape: f32[4,2], index: 4, kind: input, shape index: {}]
  %s5 = inlined_call_operand.vmem [shape: f32[2,4,1], index: 5, kind: output, shape index: {}]
  %s6 = sld [smem:[#allocation0]]
  $region53: #{tpu_custom_call.1} parent=0
    _
  %s8 = ssub.s32 1, %s6
  %s9 = scalar_select 0, %s8, %s6
  loop: start=0, step=1, limit=4
  $region2: #{tpu_custom_call.1} parent=0 // loop_pre_header
    _
  $region3: #{tpu_custom_call.1} parent=0 // loop_header
    %s11 = sphi 0, %s15
    %p12 = scmp.ge.s32.totalorder %s11, 4
    %s21 = sphi 0, %s23
    %s24 = sphi 0, %s21
    %s25 = sphi 0, %s24
    %s41 = sphi 0, %s25
    %s45 = sphi 0, %s45
    %s47 = sphi 0, %s45
    %s48 = sphi 0, %s47
    %s62 = sphi 0, %s48
    %s66 = sphi 0, %s66
    %s68 = sphi 0, %s66
    %s69 = sphi 0, %s68
    %s83 = sphi 0, %s69
    %s87 = sphi 0, %s87
    %s89 = sphi 0, %s87
    %s90 = sphi 0, %s89
    %s104 = sphi 0, %s90
    %s108 = sphi 0, %s108
    %s110 = sphi 0, %s108
    %s111 = sphi 0, %s110
    %s125 = sphi 0, %s111
    %s131 = sphi 0, %s133
    %s134 = sphi 0, %s131
    %s135 = sphi 0, %s134
    %s151 = sphi 0, %s135
  $region4: #{tpu_custom_call.1} parent=0 // loop_header_branch
    %14 = sbr.rel (%p12) target = $region8
  $region5: #{tpu_custom_call.1} parent=0 // loop_body
    %s16 = ssub.s32 %s11, 1
    %s17 = ssub.s32 %s11, 2
    %s18 = sadd.s32 %s11, 1
    %s19 = ssub.s32 %s11, %s18
    %p20 = scmp.eq.s32.totalorder %s19, 0
    %s22 = sadd.s32 %s21, 1
    %s23 = scalar_select %p20, %s21, %s22
    %p26 = pneg %p20
    %p27 = scmp.eq.s32.totalorder %s11, 1
    %p28 = por %p26, %p27
    %p29 = scmp.ne.s32.totalorder %s21, %s24
    %p30 = scmp.eq.s32.totalorder %s11, 0
    %p31 = por %p29, %p30
    %p32 = scmp.ne.s32.totalorder %s21, %s24
    %p33 = scmp.eq.s32.totalorder %s16, 1
    %p34 = por %p32, %p33
    %p35 = scmp.ne.s32.totalorder %s24, %s25
    %p36 = scmp.eq.s32.totalorder %s16, 0
    %p37 = por %p35, %p36
    %p38 = scmp.ne.s32.totalorder %s24, %s25
    %p39 = scmp.eq.s32.totalorder %s17, 1
    %p40 = por %p38, %p39
    %p42 = scmp.ne.s32.totalorder %s25, %s41
    %p43 = scmp.eq.s32.totalorder %s17, 0
    %p44 = por %p42, %p43
    %s46 = sadd.s32 %s45, 1
    %p49 = scmp.eq.s32.totalorder %s11, 1
    %p50 = scmp.ne.s32.totalorder %s45, %s47
    %p51 = scmp.eq.s32.totalorder %s11, 0
    %p52 = por %p50, %p51
    %p53 = scmp.ne.s32.totalorder %s45, %s47
    %p54 = scmp.eq.s32.totalorder %s16, 1
    %p55 = por %p53, %p54
    %p56 = scmp.ne.s32.totalorder %s47, %s48
    %p57 = scmp.eq.s32.totalorder %s16, 0
    %p58 = por %p56, %p57
    %p59 = scmp.ne.s32.totalorder %s47, %s48
    %p60 = scmp.eq.s32.totalorder %s17, 1
    %p61 = por %p59, %p60
    %p63 = scmp.ne.s32.totalorder %s48, %s62
    %p64 = scmp.eq.s32.totalorder %s17, 0
    %p65 = por %p63, %p64
    %s67 = sadd.s32 %s66, 1
    %p70 = scmp.eq.s32.totalorder %s11, 1
    %p71 = scmp.ne.s32.totalorder %s66, %s68
    %p72 = scmp.eq.s32.totalorder %s11, 0
    %p73 = por %p71, %p72
    %p74 = scmp.ne.s32.totalorder %s66, %s68
    %p75 = scmp.eq.s32.totalorder %s16, 1
    %p76 = por %p74, %p75
    %p77 = scmp.ne.s32.totalorder %s68, %s69
    %p78 = scmp.eq.s32.totalorder %s16, 0
    %p79 = por %p77, %p78
    %p80 = scmp.ne.s32.totalorder %s68, %s69
    %p81 = scmp.eq.s32.totalorder %s17, 1
    %p82 = por %p80, %p81
    %p84 = scmp.ne.s32.totalorder %s69, %s83
    %p85 = scmp.eq.s32.totalorder %s17, 0
    %p86 = por %p84, %p85
    %s88 = sadd.s32 %s87, 1
    %p91 = scmp.eq.s32.totalorder %s11, 1
    %p92 = scmp.ne.s32.totalorder %s87, %s89
    %p93 = scmp.eq.s32.totalorder %s11, 0
    %p94 = por %p92, %p93
    %p95 = scmp.ne.s32.totalorder %s87, %s89
    %p96 = scmp.eq.s32.totalorder %s16, 1
    %p97 = por %p95, %p96
    %p98 = scmp.ne.s32.totalorder %s89, %s90
    %p99 = scmp.eq.s32.totalorder %s16, 0
    %p100 = por %p98, %p99
    %p101 = scmp.ne.s32.totalorder %s89, %s90
    %p102 = scmp.eq.s32.totalorder %s17, 1
    %p103 = por %p101, %p102
    %p105 = scmp.ne.s32.totalorder %s90, %s104
    %p106 = scmp.eq.s32.totalorder %s17, 0
    %p107 = por %p105, %p106
    %s109 = sadd.s32 %s108, 1
    %p112 = scmp.eq.s32.totalorder %s11, 1
    %p113 = scmp.ne.s32.totalorder %s108, %s110
    %p114 = scmp.eq.s32.totalorder %s11, 0
    %p115 = por %p113, %p114
    %p116 = scmp.ne.s32.totalorder %s108, %s110
    %p117 = scmp.eq.s32.totalorder %s16, 1
    %p118 = por %p116, %p117
    %p119 = scmp.ne.s32.totalorder %s110, %s111
    %p120 = scmp.eq.s32.totalorder %s16, 0
    %p121 = por %p119, %p120
    %p122 = scmp.ne.s32.totalorder %s110, %s111
    %p123 = scmp.eq.s32.totalorder %s17, 1
    %p124 = por %p122, %p123
    %p126 = scmp.ne.s32.totalorder %s111, %s125
    %p127 = scmp.eq.s32.totalorder %s17, 0
    %p128 = por %p126, %p127
    %s129 = ssub.s32 %s11, %s18
    %p130 = scmp.eq.s32.totalorder %s129, 0
    %s132 = sadd.s32 %s131, 1
    %s133 = scalar_select %p130, %s131, %s132
    %p136 = pneg %p130
    %p137 = scmp.eq.s32.totalorder %s11, 1
    %p138 = por %p136, %p137
    %p139 = scmp.ne.s32.totalorder %s131, %s134
    %p140 = scmp.eq.s32.totalorder %s11, 0
    %p141 = por %p139, %p140
    %p142 = scmp.ne.s32.totalorder %s131, %s134
    %p143 = scmp.eq.s32.totalorder %s16, 1
    %p144 = por %p142, %p143
    %p145 = scmp.ne.s32.totalorder %s134, %s135
    %p146 = scmp.eq.s32.totalorder %s16, 0
    %p147 = por %p145, %p146
    %p148 = scmp.ne.s32.totalorder %s134, %s135
    %p149 = scmp.eq.s32.totalorder %s17, 1
    %p150 = por %p148, %p149
    %p152 = scmp.ne.s32.totalorder %s135, %s151
    %p153 = scmp.eq.s32.totalorder %s17, 0
    %p154 = por %p152, %p153
    %p155 = scmp.le.s32.totalorder 1, %s11
    %p156 = scmp.lt.s32.totalorder %s11, 3
    %p157 = pnand %p155, %p156
    %p158 = pneg %p157
    // Predicated region
    $region9: #{tpu_custom_call.1} parent=5 // pred_check
      _
    $region10: #{tpu_custom_call.1} parent=5 // pred_check_branch
      %160 = sbr.rel (%p157) target = $region12
    $region11: #{tpu_custom_call.1} parent=5 // pred_region
      %s161 = ssub.s32 %s11, 1
      // Predicated region
      $region13: #{tpu_custom_call.1} parent=11 // pred_check
        %p162 = pneg %p58
      $region14: #{tpu_custom_call.1} parent=11 // pred_check_branch
        %164 = sbr.rel (%p162) target = $region16
      $region15: #{tpu_custom_call.1} parent=11 // pred_region
        _
      $region16: #{tpu_custom_call.1} parent=11 // pred_fallthru
        _
      // Predicated region
      $region17: #{tpu_custom_call.1} parent=11 // pred_check
        %p165 = pneg %p79
      $region18: #{tpu_custom_call.1} parent=11 // pred_check_branch
        %167 = sbr.rel (%p165) target = $region20
      $region19: #{tpu_custom_call.1} parent=11 // pred_region
        _
      $region20: #{tpu_custom_call.1} parent=11 // pred_fallthru
        _
      // Predicated region
      $region21: #{tpu_custom_call.1} parent=11 // pred_check
        %p168 = pneg %p100
      $region22: #{tpu_custom_call.1} parent=11 // pred_check_branch
        %170 = sbr.rel (%p168) target = $region24
      $region23: #{tpu_custom_call.1} parent=11 // pred_region
        _
      $region24: #{tpu_custom_call.1} parent=11 // pred_fallthru
        _
      // Predicated region
      $region25: #{tpu_custom_call.1} parent=11 // pred_check
        %p171 = pneg %p121
      $region26: #{tpu_custom_call.1} parent=11 // pred_check_branch
        %173 = sbr.rel (%p171) target = $region28
      $region27: #{tpu_custom_call.1} parent=11 // pred_region
        _
      $region28: #{tpu_custom_call.1} parent=11 // pred_fallthru
        _
    $region12: #{tpu_custom_call.1} parent=5 // pred_fallthru
      _
    %p174 = scmp.lt.s32.totalorder %s11, 2
    // Predicated region
    $region29: #{tpu_custom_call.1} parent=5 // pred_check
      %p175 = pneg %p174
    $region30: #{tpu_custom_call.1} parent=5 // pred_check_branch
      %177 = sbr.rel (%p175) target = $region32
    $region31: #{tpu_custom_call.1} parent=5 // pred_region
      // Predicated region
      $region33: #{tpu_custom_call.1} parent=31 // pred_check
        %p178 = pneg %p31
      $region34: #{tpu_custom_call.1} parent=31 // pred_check_branch
        %180 = sbr.rel (%p178) target = $region36
      $region35: #{tpu_custom_call.1} parent=31 // pred_region
        %p181 = scmp.lt.s32.totalorder %s11, 1
        %s182 = scalar_select %p181, %s11, 1
        %s183 = smul.addr %s182, 2
        %s184 = smul.addr %s183, 4
        %s185 = scalar_lea.vmem %s0, %s184
      $region36: #{tpu_custom_call.1} parent=31 // pred_fallthru
        _
    $region32: #{tpu_custom_call.1} parent=5 // pred_fallthru
      _
    %p186 = scmp.le.s32.totalorder 1, %s11
    %p187 = scmp.lt.s32.totalorder %s11, 3
    %p188 = pnand %p186, %p187
    %p189 = pneg %p188
    // Predicated region
    $region37: #{tpu_custom_call.1} parent=5 // pred_check
      _
    $region38: #{tpu_custom_call.1} parent=5 // pred_check_branch
      %191 = sbr.rel (%p188) target = $region40
    $region39: #{tpu_custom_call.1} parent=5 // pred_region
      %s192 = ssub.s32 %s11, 1
      %p193 = scmp.lt.s32.totalorder %s16, 1
      %s194 = scalar_select %p193, %s16, 1
      %s195 = smul.addr %s194, 2
      %s196 = smul.addr %s195, 4
      %s197 = scalar_lea.vmem %s0, %s196
      %p198 = pneg %p37
      %p199 = pneg %p34
      %p200 = pneg %p58
      %p201 = pneg %p55
      %p202 = pneg %p79
      %p203 = pneg %p76
      %p204 = pneg %p100
      %p205 = pneg %p97
      %p206 = pneg %p121
      %p207 = pneg %p118
      %p208 = pneg %p147
      %p209 = pneg %p144
      %p210 = scmp.lt.s32.totalorder %s16, 1
      %s211 = scalar_select %p210, %s16, 1
      %s212 = smul.addr %s211, 4
      %s213 = scalar_lea.vmem %s5, %s212
      %p214 = scmp.lt.s32.totalorder %s16, 1
      %s215 = scalar_select %p214, %s16, 1
      %s216 = smul.addr %s215, 2
      %s217 = smul.addr %s216, 4
      %s218 = scalar_lea.vmem %s0, %s217
      %p219 = scmp.lt.s32.totalorder %s16, 1
      %s220 = scalar_select %p219, %s16, 1
      %s221 = smul.addr %s220, 4
      %s222 = scalar_lea.vmem %s5, %s221
      %v223 = vld [vmem:[%s218] sm:$0xff]
      %v225 = vcombine.high %v223, %v223
      %vm227 = vcmask 1043456
      %v228 = vsel %vm227, %v223, 0.0
      %v229 = vsel %vm227, %v225, 0.0
      %v230 = vadd.f32 %v228, %v229
      %231 = vadd.xlane.f32.xlu0 %v230
      %v232 = vpop.xlane.xlu0 %231
      %v233 = vmul.f32 %v232, 0.00390625
      %v234 = vsel %vm227, %v223, -inf
      %v235 = vsel %vm227, %v225, -inf
      %v236 = vmax.f32 %v234, %v235
      %237 = vmax.xlane.f32.xlu0 %v236
      %v238 = vpop.xlane.xlu0 %237
      %v239 = vld [vmem:[%s1] sm:$0xf]
      %v240 = vld [vmem:[%s2] sm:$0xf]
      %v241 = vld [vmem:[%s3] sm:$0xf]
      %v242 = vld [vmem:[%s4] sm:$0xf]
      %v243 = vmul.f32 %v239, %v233
      %vm244 = vcmask 11264
      %v245 = vsel %vm244, %v243, 0.0
      %v246 = vrot.slane %v245, 4
      %v247 = vadd.f32 %v245, %v246
      %v248 = vrot.slane %v247, 2
      %v249 = vadd.f32 %v247, %v248
      %v250 = vrot.slane %v249, 1
      %v251 = vadd.f32 %v249, %v250
      %v252 = vmul.f32 %v240, %v238
      %v253 = vsel %vm244, %v252, 0.0
      %v254 = vrot.slane %v253, 4
      %v255 = vadd.f32 %v253, %v254
      %v256 = vrot.slane %v255, 2
      %v257 = vadd.f32 %v255, %v256
      %v258 = vrot.slane %v257, 1
      %v259 = vadd.f32 %v257, %v258
      %v260 = vxor.u32 %v251, 2147483648
      %v261 = vmul.f32 %v260, 1.442695
      %v262 = vpow.pop %v261
      %v263 = vadd.f32 %v262, 1.0
      %v264 = vrcp.pop %v263
      %v265 = vmul.f32 1.0, %v264
      %v266 = vmul.f32 %v251, %v265
      %v267 = vxor.u32 %v259, 2147483648
      %v268 = vmul.f32 %v267, 1.442695
      %v269 = vpow.pop %v268
      %v270 = vadd.f32 %v269, 1.0
      %v271 = vrcp.pop %v270
      %v272 = vmul.f32 1.0, %v271
      %v273 = vmul.f32 %v259, %v272
      %v274 = vmul.f32 %v241, %v266
      %v275 = vsel %vm244, %v274, 0.0
      %276 = vadd.xlane.f32.xlu0 %v275
      %v277 = vpop.xlane.xlu0 %276
      %v278 = vmul.f32 %v242, %v273
      %v279 = vsel %vm244, %v278, 0.0
      %280 = vadd.xlane.f32.xlu0 %v279
      %v281 = vpop.xlane.xlu0 %280
      %v282 = vadd.f32 %v277, %v281
      %v283 = vxor.u32 %v282, 2147483648
      %v284 = vmul.f32 %v283, 1.442695
      %v285 = vpow.pop %v284
      %v286 = vadd.f32 %v285, 1.0
      %v287 = vrcp.pop %v286
      %v288 = vmul.f32 1.0, %v287
      %vm289 = vcmask 3072
      %290 = vst.msk [vmem:[%s222] sm:$0xf] %vm289, %v288
      %p291 = scmp.lt.s32.totalorder %s16, 1
      %s292 = scalar_select %p291, %s16, 1
      %s293 = smul.addr %s292, 4
      %s294 = scalar_lea.vmem %s5, %s293
      // Predicated region
      $region41: #{tpu_custom_call.1} parent=39 // pred_check
        %p295 = pneg %p144
      $region42: #{tpu_custom_call.1} parent=39 // pred_check_branch
        %297 = sbr.rel (%p295) target = $region44
      $region43: #{tpu_custom_call.1} parent=39 // pred_region
        _
      $region44: #{tpu_custom_call.1} parent=39 // pred_fallthru
        _
    $region40: #{tpu_custom_call.1} parent=5 // pred_fallthru
      _
    %p298 = scmp.le.s32.totalorder 2, %s11
    // Predicated region
    $region45: #{tpu_custom_call.1} parent=5 // pred_check
      %p299 = pneg %p298
    $region46: #{tpu_custom_call.1} parent=5 // pred_check_branch
      %301 = sbr.rel (%p299) target = $region48
    $region47: #{tpu_custom_call.1} parent=5 // pred_region
      %s302 = ssub.s32 %s11, 2
      // Predicated region
      $region49: #{tpu_custom_call.1} parent=47 // pred_check
        %p303 = pneg %p150
      $region50: #{tpu_custom_call.1} parent=47 // pred_check_branch
        %305 = sbr.rel (%p303) target = $region52
      $region51: #{tpu_custom_call.1} parent=47 // pred_region
        %p306 = scmp.lt.s32.totalorder %s17, 1
        %s307 = scalar_select %p306, %s17, 1
        %s308 = smul.addr %s307, 4
        %s309 = scalar_lea.vmem %s5, %s308
      $region52: #{tpu_custom_call.1} parent=47 // pred_fallthru
        _
    $region48: #{tpu_custom_call.1} parent=5 // pred_fallthru
      _
  $region6: #{tpu_custom_call.1} parent=0 // loop_footer
    %s15 = sadd.s32 1, %s11
  $region7: #{tpu_custom_call.1} parent=0 // loop_footer_branch
    %10 = sbr.rel target = $region3
  $region8: #{tpu_custom_call.1} parent=0 // loop_exit
    _

</llo_original>
